<compile_context>
chip_gen: v6e
topology: v6e:2x2x1
jax: 0.10.0
libtpu: 0.0.40
codegen_flags: <defaults>
</compile_context>

<pallas_src>
import math

import jax
import jax.numpy as jnp
from jax.experimental import pallas as pl
from jax.experimental.pallas import tpu as pltpu

_LOG_2PI = math.log(2.0 * math.pi)
_MAX_TILE_B = 512  # batch tile: multiple of 128, sized for v7x's 64 MiB VMEM too


def _tile_b(B):
    # Full-extent block when it fits (always a legal block shape); otherwise
    # 512-row tiles with a cdiv grid (trailing partial block handled by Pallas).
    return B if B <= _MAX_TILE_B else _MAX_TILE_B


def _parallel_params():
    return pltpu.CompilerParams(dimension_semantics=("parallel",))


# ----------------------------------------------------------------------------
# Kernel 1: forward  -- one MXU matmul with concatenated weights -> [mu|logvar]
# ----------------------------------------------------------------------------
def _forward_kernel(x_ref, w_ref, b_ref, mu_ref, lv_ref):
    nz = mu_ref.shape[-1]
    h = jnp.dot(x_ref[...], w_ref[...], preferred_element_type=jnp.float32)
    h = h + b_ref[...]
    mu_ref[...] = h[:, :nz]
    lv_ref[...] = h[:, nz:]


def linear_forward(x, w, b):
    """x:(B,D), w:(D,2nz), b:(1,2nz) -> (mu, logvar), each (B, nz)."""
    B, D = x.shape
    nz2 = w.shape[1]
    nz = nz2 // 2
    TB = _tile_b(B)
    nb = pl.cdiv(B, TB)
    cost = pl.CostEstimate(
        flops=2 * B * D * nz2,
        transcendentals=0,
        bytes_accessed=4 * (B * D + D * nz2 + nz2 + 2 * B * nz),
    )
    return pl.pallas_call(
        _forward_kernel,
        out_shape=(
            jax.ShapeDtypeStruct((B, nz), jnp.float32),
            jax.ShapeDtypeStruct((B, nz), jnp.float32),
        ),
        grid=(nb,),
        in_specs=[
            pl.BlockSpec((TB, D), lambda i: (i, 0)),
            pl.BlockSpec((D, nz2), lambda i: (0, 0)),   # resident weights
            pl.BlockSpec((1, nz2), lambda i: (0, 0)),   # resident bias
        ],
        out_specs=(
            pl.BlockSpec((TB, nz), lambda i: (i, 0)),
            pl.BlockSpec((TB, nz), lambda i: (i, 0)),
        ),
        compiler_params=_parallel_params(),
        cost_estimate=cost,
    )(x, w, b)


# ----------------------------------------------------------------------------
# Kernel 2: fused encode -- forward + reparameterize + KL in one pass
#   z  = mu + eps * exp(0.5*logvar)
#   KL = 0.5 * sum(mu^2 + exp(logvar) - logvar - 1, axis=1)   (var = std*std)
# ----------------------------------------------------------------------------
def _encode_kernel(x_ref, w_ref, b_ref, eps_ref, mu_ref, lv_ref, z_ref, kl_ref):
    nz = mu_ref.shape[-1]
    h = jnp.dot(x_ref[...], w_ref[...], preferred_element_type=jnp.float32)
    h = h + b_ref[...]
    mu = h[:, :nz]
    lv = h[:, nz:]
    std = jnp.exp(0.5 * lv)      # single EUP exp; var = std*std is a VPU mul
    var = std * std
    mu_ref[...] = mu
    lv_ref[...] = lv
    z_ref[...] = mu[None, :, :] + eps_ref[...] * std[None, :, :]
    # KL kept as a (TILE_B, 1) block (tiny traffic); lane-dense variant would
    # need a sublane->lane transpose, not worth it for B floats.
    kl_ref[...] = 0.5 * jnp.sum(mu * mu + var - lv - 1.0, axis=1, keepdims=True)


def encode_fused(x, w, b, eps):
    """Returns (mu, logvar, z, kl); mu/logvar never written/read via HBM twice."""
    B, D = x.shape
    S, _, nz = eps.shape
    nz2 = 2 * nz
    TB = _tile_b(B)
    nb = pl.cdiv(B, TB)
    cost = pl.CostEstimate(
        flops=2 * B * D * nz2 + 8 * B * nz + 3 * S * B * nz,
        transcendentals=B * nz,
        bytes_accessed=4 * (B * D + D * nz2 + nz2 + 2 * S * B * nz + 2 * B * nz + B),
    )
    mu, lv, z, kl = pl.pallas_call(
        _encode_kernel,
        out_shape=(
            jax.ShapeDtypeStruct((B, nz), jnp.float32),
            jax.ShapeDtypeStruct((B, nz), jnp.float32),
            jax.ShapeDtypeStruct((S, B, nz), jnp.float32),
            jax.ShapeDtypeStruct((B, 1), jnp.float32),
        ),
        grid=(nb,),
        in_specs=[
            pl.BlockSpec((TB, D), lambda i: (i, 0)),
            pl.BlockSpec((D, nz2), lambda i: (0, 0)),
            pl.BlockSpec((1, nz2), lambda i: (0, 0)),
            pl.BlockSpec((S, TB, nz), lambda i: (0, i, 0)),
        ],
        out_specs=(
            pl.BlockSpec((TB, nz), lambda i: (i, 0)),
            pl.BlockSpec((TB, nz), lambda i: (i, 0)),
            pl.BlockSpec((S, TB, nz), lambda i: (0, i, 0)),
            pl.BlockSpec((TB, 1), lambda i: (i, 0)),
        ),
        compiler_params=_parallel_params(),
        cost_estimate=cost,
    )(x, w, b, eps)
    return mu, lv, z, kl[:, 0]


# ----------------------------------------------------------------------------
# Kernel 3: fused eval_inference_dist -- forward + Gaussian log-density
#   log q(z|x) = -0.5*sum(dev^2 * exp(-logvar), -1)
#                - 0.5*(nz*log(2*pi) + sum(logvar, -1))
# ----------------------------------------------------------------------------
def _logdensity_fused_kernel(x_ref, w_ref, b_ref, z_ref, out_ref):
    nz = z_ref.shape[-1]
    h = jnp.dot(x_ref[...], w_ref[...], preferred_element_type=jnp.float32)
    h = h + b_ref[...]
    mu = h[:, :nz]
    lv = h[:, nz:]
    inv_var = jnp.exp(-lv)                         # exp + mul instead of exp + div
    dev = z_ref[...] - mu[None, :, :]
    quad = jnp.sum(dev * dev * inv_var[None, :, :], axis=-1)   # (S, TB)
    norm = nz * _LOG_2PI + jnp.sum(lv, axis=-1)                # (TB,)
    out_ref[...] = -0.5 * quad - 0.5 * norm[None, :]


def eval_inference_dist_fused(x, w, b, z):
    B, D = x.shape
    S, _, nz = z.shape
    nz2 = 2 * nz
    TB = _tile_b(B)
    nb = pl.cdiv(B, TB)
    cost = pl.CostEstimate(
        flops=2 * B * D * nz2 + 4 * S * B * nz,
        transcendentals=B * nz,
        bytes_accessed=4 * (B * D + D * nz2 + nz2 + S * B * nz + S * B),
    )
    return pl.pallas_call(
        _logdensity_fused_kernel,
        out_shape=jax.ShapeDtypeStruct((S, B), jnp.float32),
        grid=(nb,),
        in_specs=[
            pl.BlockSpec((TB, D), lambda i: (i, 0)),
            pl.BlockSpec((D, nz2), lambda i: (0, 0)),
            pl.BlockSpec((1, nz2), lambda i: (0, 0)),
            pl.BlockSpec((S, TB, nz), lambda i: (0, i, 0)),
        ],
        out_specs=pl.BlockSpec((S, TB), lambda i: (0, i)),
        compiler_params=_parallel_params(),
        cost_estimate=cost,
    )(x, w, b, z)


# ----------------------------------------------------------------------------
# From-params helpers (public reparameterize / eval_inference_dist(param=...))
# ----------------------------------------------------------------------------
def _reparam_kernel(mu_ref, lv_ref, eps_ref, z_ref):
    std = jnp.exp(0.5 * lv_ref[...])
    z_ref[...] = mu_ref[...][None, :, :] + eps_ref[...] * std[None, :, :]


def reparameterize_from_params(mu, logvar, eps):
    B, nz = mu.shape
    S = eps.shape[0]
    TB = _tile_b(B)
    nb = pl.cdiv(B, TB)
    return pl.pallas_call(
        _reparam_kernel,
        out_shape=jax.ShapeDtypeStruct((S, B, nz), jnp.float32),
        grid=(nb,),
        in_specs=[
            pl.BlockSpec((TB, nz), lambda i: (i, 0)),
            pl.BlockSpec((TB, nz), lambda i: (i, 0)),
            pl.BlockSpec((S, TB, nz), lambda i: (0, i, 0)),
        ],
        out_specs=pl.BlockSpec((S, TB, nz), lambda i: (0, i, 0)),
        compiler_params=_parallel_params(),
    )(mu, logvar, eps)


def _logdensity_params_kernel(mu_ref, lv_ref, z_ref, out_ref):
    nz = mu_ref.shape[-1]
    mu = mu_ref[...]
    lv = lv_ref[...]
    inv_var = jnp.exp(-lv)
    dev = z_ref[...] - mu[None, :, :]
    quad = jnp.sum(dev * dev * inv_var[None, :, :], axis=-1)
    norm = nz * _LOG_2PI + jnp.sum(lv, axis=-1)
    out_ref[...] = -0.5 * quad - 0.5 * norm[None, :]


def eval_inference_dist_from_params(mu, logvar, z):
    S, B, nz = z.shape
    TB = _tile_b(B)
    nb = pl.cdiv(B, TB)
    return pl.pallas_call(
        _logdensity_params_kernel,
        out_shape=jax.ShapeDtypeStruct((S, B), jnp.float32),
        grid=(nb,),
        in_specs=[
            pl.BlockSpec((TB, nz), lambda i: (i, 0)),
            pl.BlockSpec((TB, nz), lambda i: (i, 0)),
            pl.BlockSpec((S, TB, nz), lambda i: (0, i, 0)),
        ],
        out_specs=pl.BlockSpec((S, TB), lambda i: (0, i)),
        compiler_params=_parallel_params(),
    )(mu, logvar, z)


# ----------------------------------------------------------------------------
# Thin module-like wrapper mirroring GaussianEncoderBase's API
# ----------------------------------------------------------------------------
class GaussianEncoderPallas:
    def __init__(self, key, din, nz, use_bf16_matmul=False):
        k1, k2 = jax.random.split(key)
        scale = 1.0 / math.sqrt(din)
        w_mu = (jax.random.uniform(k1, (din, nz), jnp.float32) * 2 - 1) * scale
        w_lv = (jax.random.uniform(k2, (din, nz), jnp.float32) * 2 - 1) * scale
        # Concatenated projection: one MXU weight push for [mu | logvar].
        self.w = jnp.concatenate([w_mu, w_lv], axis=1)      # (din, 2*nz)
        self.b = jnp.zeros((1, 2 * nz), jnp.float32)
        self.nz = nz
        # Optional bf16 MXU path (v6e/v7x): halves x/W DMA bytes; accumulation
        # and elementwise math stay f32.  Off by default for f32-exact numerics.
        self._mm_dtype = jnp.bfloat16 if use_bf16_matmul else jnp.float32

    # parameter views (for reference checks)
    @property
    def w_mu(self):
        return self.w[:, : self.nz]

    @property
    def w_lv(self):
        return self.w[:, self.nz:]

    def _mm_inputs(self, x):
        return x.astype(self._mm_dtype), self.w.astype(self._mm_dtype)

    def forward(self, x):
        xm, wm = self._mm_inputs(x)
        return linear_forward(xm, wm, self.b)

    def encode(self, x, eps):
        xm, wm = self._mm_inputs(x)
        _, _, z, kl = encode_fused(xm, wm, self.b, eps)
        return z, kl

    def sample(self, x, eps):
        xm, wm = self._mm_inputs(x)
        mu, logvar, z, _ = encode_fused(xm, wm, self.b, eps)
        return z, (mu, logvar)

    def reparameterize(self, mu, logvar, eps):
        # TODO(synk): eps could be drawn in-kernel with pltpu.prng_seed +
        # stateful_normal to avoid the HBM read, but that changes the RNG stream.
        return reparameterize_from_params(mu, logvar, eps)

    def sample_from_inference(self, x, nsamples=1):
        mu, _ = self.forward(x)
        return jnp.broadcast_to(mu[None], (nsamples,) + mu.shape)

    def eval_inference_dist(self, x, z, param=None):
        if param is None:
            xm, wm = self._mm_inputs(x)
            return eval_inference_dist_fused(xm, wm, self.b, z)
        mu, logvar = param
        return eval_inference_dist_from_params(mu, logvar, z)

    # TODO(synk): calc_mi's pairwise (BxB) density + log_sum_exp aggregation is
    # left as plain-JAX glue over kernel outputs (no dedicated Pallas kernel).


if __name__ == "__main__":
    B, D, NZ, NS = 8, 32, 16, 2

    key = jax.random.PRNGKey(0)
    k_param, k_x, k_eps = jax.random.split(key, 3)

    enc = GaussianEncoderPallas(k_param, D, NZ)
    x = jax.random.normal(k_x, (B, D), jnp.float32)
    eps = jax.random.normal(k_eps, (NS, B, NZ), jnp.float32)

    # Pallas paths
    mu, logvar = enc.forward(x)
    z, kl = enc.encode(x, eps)
    z_s, (mu_s, lv_s) = enc.sample(x, eps)
    z_rp = enc.reparameterize(mu, logvar, eps)
    logq = enc.eval_inference_dist(x, z)
    logq_p = enc.eval_inference_dist(x, z, param=(mu, logvar))
    jax.block_until_ready((mu, logvar, z, kl, z_s, mu_s, lv_s, z_rp, logq, logq_p))

    # Pure-JAX reference
    mu_ref = x @ enc.w_mu + enc.b[:, :NZ]
    lv_ref = x @ enc.w_lv + enc.b[:, NZ:]
    std_ref = jnp.exp(0.5 * lv_ref)
    z_ref = mu_ref[None] + eps * std_ref[None]
    kl_ref = 0.5 * jnp.sum(mu_ref**2 + jnp.exp(lv_ref) - lv_ref - 1.0, axis=1)
    dev = z_ref - mu_ref[None]
    logq_ref = (
        -0.5 * jnp.sum(dev**2 / jnp.exp(lv_ref)[None], axis=-1)
        - 0.5 * (NZ * math.log(2 * math.pi) + jnp.sum(lv_ref, axis=-1))[None]
    )

    assert jnp.allclose(mu, mu_ref, atol=1e-5), "mu mismatch"
    assert jnp.allclose(logvar, lv_ref, atol=1e-5), "logvar mismatch"
    assert jnp.allclose(mu_s, mu_ref, atol=1e-5), "sample mu mismatch"
    assert jnp.allclose(z, z_ref, atol=1e-5), "z mismatch"
    assert jnp.allclose(z_s, z_ref, atol=1e-5), "sample z mismatch"
    assert jnp.allclose(z_rp, z_ref, atol=1e-5), "reparameterize mismatch"
    assert jnp.allclose(kl, kl_ref, atol=1e-5), "KL mismatch"
    assert jnp.allclose(logq, logq_ref, atol=1e-4), "log-density mismatch"
    assert jnp.allclose(logq_p, logq_ref, atol=1e-4), "log-density (param) mismatch"

    print("KERNEL_OK")
</pallas_src>

<mosaic_0001>
module attributes {stable_mosaic.version = 11 : i64} {
  func.func @_forward_kernel(%arg0: i32, %arg1: memref<8x32xf32, #tpu.memory_space<vmem>>, %arg2: memref<32x32xf32, #tpu.memory_space<vmem>>, %arg3: memref<1x32xf32, #tpu.memory_space<vmem>>, %arg4: memref<8x16xf32, #tpu.memory_space<vmem>>, %arg5: memref<8x16xf32, #tpu.memory_space<vmem>>) attributes {dimension_semantics = [#tpu.dimension_semantics<parallel>], iteration_bounds = array<i64: 1>, scalar_prefetch = 0 : i64, scratch_operands = 0 : i64, tpu.core_type = #tpu.core_type<tc>, window_params = [{transform_indices = @transform_0, window_bounds = array<i64: 8, 32>}, {pipeline_mode = #tpu.pipeline_mode<synchronous>, transform_indices = @transform_1, window_bounds = array<i64: 32, 32>}, {pipeline_mode = #tpu.pipeline_mode<synchronous>, transform_indices = @transform_2, window_bounds = array<i64: 1, 32>}, {transform_indices = @transform_3, window_bounds = array<i64: 8, 16>}, {transform_indices = @transform_4, window_bounds = array<i64: 8, 16>}]} {
    %c0 = arith.constant 0 : index
    %c0_0 = arith.constant 0 : index
    %0 = vector.load %arg1[%c0, %c0_0] : memref<8x32xf32, #tpu.memory_space<vmem>>, vector<8x32xf32>
    %c0_1 = arith.constant 0 : index
    %c0_2 = arith.constant 0 : index
    %1 = vector.load %arg2[%c0_1, %c0_2] : memref<32x32xf32, #tpu.memory_space<vmem>>, vector<32x32xf32>
    %cst = arith.constant dense<0.000000e+00> : vector<8x32xf32>
    %2 = tpu.matmul %0, %1, %cst {dimension_numbers = #tpu.dot_dimension_numbers<[1], [0], [0], [1], [0, 0, 1, 1], [], []>} : vector<8x32xf32>, vector<32x32xf32>, vector<8x32xf32> -> vector<8x32xf32>
    %c0_3 = arith.constant 0 : index
    %c0_4 = arith.constant 0 : index
    %3 = vector.load %arg3[%c0_3, %c0_4] : memref<1x32xf32, #tpu.memory_space<vmem>>, vector<1x32xf32>
    %4 = vector.broadcast %3 : vector<1x32xf32> to vector<8x32xf32>
    %5 = arith.addf %2, %4 : vector<8x32xf32>
    %6 = vector.extract_strided_slice %5 {offsets = [0, 0], sizes = [8, 16], strides = [1, 1]} : vector<8x32xf32> to vector<8x16xf32>
    %c0_5 = arith.constant 0 : index
    %c0_6 = arith.constant 0 : index
    %7 = vector.load %arg4[%c0_5, %c0_6] : memref<8x16xf32, #tpu.memory_space<vmem>>, vector<8x16xf32>
    tpu.vector_store %arg4[%c0_5, %c0_6], %6 {strides = array<i32>} : memref<8x16xf32, #tpu.memory_space<vmem>>, vector<8x16xf32>,
    %8 = vector.extract_strided_slice %5 {offsets = [0, 16], sizes = [8, 16], strides = [1, 1]} : vector<8x32xf32> to vector<8x16xf32>
    %c0_7 = arith.constant 0 : index
    %c0_8 = arith.constant 0 : index
    %9 = vector.load %arg5[%c0_7, %c0_8] : memref<8x16xf32, #tpu.memory_space<vmem>>, vector<8x16xf32>
    tpu.vector_store %arg5[%c0_7, %c0_8], %8 {strides = array<i32>} : memref<8x16xf32, #tpu.memory_space<vmem>>, vector<8x16xf32>,
    return
  }
  func.func @transform_0(%arg0: i32) -> (i32, i32) {
    %c0_i32 = arith.constant 0 : i32
    %c0_i32_0 = arith.constant 0 : i32
    return %arg0, %c0_i32 : i32, i32
  }
  func.func @transform_1(%arg0: i32) -> (i32, i32) {
    %c0_i32 = arith.constant 0 : i32
    %c0_i32_0 = arith.constant 0 : i32
    %c0_i32_1 = arith.constant 0 : i32
    return %c0_i32, %c0_i32_0 : i32, i32
  }
  func.func @transform_2(%arg0: i32) -> (i32, i32) {
    %c0_i32 = arith.constant 0 : i32
    %c0_i32_0 = arith.constant 0 : i32
    %c0_i32_1 = arith.constant 0 : i32
    return %c0_i32, %c0_i32_0 : i32, i32
  }
  func.func @transform_3(%arg0: i32) -> (i32, i32) {
    %c0_i32 = arith.constant 0 : i32
    %c0_i32_0 = arith.constant 0 : i32
    return %arg0, %c0_i32 : i32, i32
  }
  func.func @transform_4(%arg0: i32) -> (i32, i32) {
    %c0_i32 = arith.constant 0 : i32
    %c0_i32_0 = arith.constant 0 : i32
    return %arg0, %c0_i32 : i32, i32
  }
}

</mosaic_0001>

<llo_original>
// kernel: tpu_custom_call.1
$region0: #{tpu_custom_call.1}
  #allocation0 [shape = 'u32[]', space=smem, size = 0x4, offset = 0x4, fixed_abs, tag = 'smem constant byte address 0x4 - core index']
  #allocation1 [shape = 'u32[144,128]{1,0:T(1,128)}', space=vmem, size = 0x12000, scoped, tag = 'internal scratch']
  %s0 = inlined_call_operand.hbm [shape: f32[8,32], index: 0, kind: input, shape index: {}]
  %s1 = inlined_call_operand.hbm [shape: f32[32,32], index: 1, kind: input, shape index: {}]
  %s2 = inlined_call_operand.vmem [shape: f32[1,32], index: 2, kind: input, shape index: {}]
  %s3 = inlined_call_operand.hbm [shape: f32[8,16], index: 3, kind: output, shape index: {0}]
  %s4 = inlined_call_operand.hbm [shape: f32[8,16], index: 4, kind: output, shape index: {1}]
  %5 = xla_tuple %s3, %s4
  %s6 = sld [smem:[#allocation0]]
  $region38: #{tpu_custom_call.1} parent=0
    _
  %s8 = ssub.s32 1, %s6
  %s9 = scalar_select 0, %s8, %s6
  $region1: #{tpu_custom_call.1} parent=0
    #allocation2 [shape = 'u8[4096]{0}', space=vmem, size = 0x1000, scoped, tag = 'input window, operand 0, single buffered']
    #allocation3 [shape = 's32[1]{0}', space=sflag, size = 0x4, scoped, tag = 'scoped memory for tpu_custom_call.1']
    #allocation4 [shape = 's32[1]{0}', space=sflag, size = 0x4, scoped, tag = 'scoped memory for tpu_custom_call.1']
    #allocation5 [shape = 'u8[16384]{0}', space=vmem, size = 0x4000, scoped, tag = 'input window, operand 1, single buffered']
    #allocation6 [shape = 's32[1]{0}', space=sflag, size = 0x4, scoped, tag = 'scoped memory for tpu_custom_call.1']
    #allocation7 [shape = 'u8[4096]{0}', space=vmem, size = 0x1000, scoped, tag = 'output window, operand 0, single buffered']
    #allocation8 [shape = 'u8[4096]{0}', space=vmem, size = 0x1000, scoped, tag = 'output window, operand 1, single buffered']
    #allocation9 [shape = 's32[1]{0}', space=sflag, size = 0x4, scoped, tag = 'scoped memory for tpu_custom_call.1']
    %10 = vsyncpa [#allocation3], 0
    %11 = vsyncpa [#allocation6], 0
    %12 = vsyncpa [#allocation4], 0
    %13 = vsyncpa [#allocation9], 0
    // Predicated region
    $region2: #{tpu_custom_call.1} parent=1 // pred_check
      _
    $region3: #{tpu_custom_call.1} parent=1 // pred_check_branch
      %15 = sbr.rel (0) target = $region5
    $region4: #{tpu_custom_call.1} parent=1 // pred_region
      %s17 = ssub.s32 128, 128
      %18 = vsyncadd [#allocation3], %s17
      %s20 = sshll.u32 [#allocation2], 4
      %s21 = int_to_ptr.vmem [resolvable:$true] %s20
      %23 = dma.hbm_to_vmem [thread:$0]  %s0, 128, %s21, [#allocation3]
    $region5: #{tpu_custom_call.1} parent=1 // pred_fallthru
      _
    // Predicated region
    $region6: #{tpu_custom_call.1} parent=1 // pred_check
      _
    $region7: #{tpu_custom_call.1} parent=1 // pred_check_branch
      %25 = sbr.rel (0) target = $region9
    $region8: #{tpu_custom_call.1} parent=1 // pred_region
      %s27 = ssub.s32 512, 512
      %28 = vsyncadd [#allocation6], %s27
      %s29 = sshll.u32 [#allocation5], 4
      %s30 = int_to_ptr.vmem [resolvable:$true] %s29
      %35 = dma.hbm_to_vmem [thread:$0]  %s1, 512, %s30, [#allocation6], 128, 128, 8
    $region9: #{tpu_custom_call.1} parent=1 // pred_fallthru
      _
    // Predicated region
    $region10: #{tpu_custom_call.1} parent=1 // pred_check
      _
    $region11: #{tpu_custom_call.1} parent=1 // pred_check_branch
      %37 = sbr.rel (0) target = $region13
    $region12: #{tpu_custom_call.1} parent=1 // pred_region
      _
    $region13: #{tpu_custom_call.1} parent=1 // pred_fallthru
      _
    // Predicated region
    $region14: #{tpu_custom_call.1} parent=1 // pred_check
      _
    $region15: #{tpu_custom_call.1} parent=1 // pred_check_branch
      %39 = sbr.rel (0) target = $region17
    $region16: #{tpu_custom_call.1} parent=1 // pred_region
      %40 = dma.done [#allocation3], 128
    $region17: #{tpu_custom_call.1} parent=1 // pred_fallthru
      _
    // Predicated region
    $region18: #{tpu_custom_call.1} parent=1 // pred_check
      _
    $region19: #{tpu_custom_call.1} parent=1 // pred_check_branch
      %42 = sbr.rel (0) target = $region21
    $region20: #{tpu_custom_call.1} parent=1 // pred_region
      %43 = dma.done [#allocation6], 512
    $region21: #{tpu_custom_call.1} parent=1 // pred_fallthru
      _
    %v44 = vld [vmem:[#allocation2] sm:$0xff]
    %v45 = vld [vmem:[#allocation5] sm:$0xff]
    %v46 = vld [vmem:[#allocation5 + $0x8] sm:$0xff]
    %v47 = vld [vmem:[#allocation5 + $0x10] sm:$0xff]
    %v48 = vld [vmem:[#allocation5 + $0x18] sm:$0xff]
    %v49 = vld [vmem:[%s2] sm:$0x1]
    %v51 = vlaneseq
    %v52 = vshrl.u32 %v51, 7
    %v53 = vsub.s32 0, %v52
    %v54 = vrot.slane %v49, %v53
    %vm56 = vcmask 261120
    %v58 = vsel %vm56, %v44, 0
    %60 = vmatprep.subr.mxu0 0.0
    %61 = vmatpush1.msra.mxu0 0.0
    %62 = vmatprep.subr.mxu0 0.0
    %63 = vmatpush1.msra.mxu0 0.0
    %64 = vmatprep.subr.mxu0 0.0
    %65 = vmatpush1.msra.mxu0 0.0
    %66 = vmatprep.subr.mxu0 0.0
    %67 = vmatpush1.msra.mxu0 0.0
    %68 = vmatprep.subr.mxu0 0.0
    %69 = vmatpush1.msra.mxu0 0.0
    %70 = vmatprep.subr.mxu0 0.0
    %71 = vmatpush1.msra.mxu0 0.0
    %72 = vmatprep.subr.mxu0 0.0
    %73 = vmatpush1.msra.mxu0 0.0
    %74 = vmatprep.subr.mxu0 0.0
    %75 = vmatpush1.msra.mxu0 0.0
    %76 = vmatprep.subr.mxu0 0.0
    %77 = vmatpush1.msra.mxu0 0.0
    %78 = vmatprep.subr.mxu0 0.0
    %79 = vmatpush1.msra.mxu0 0.0
    %80 = vmatprep.subr.mxu0 0.0
    %81 = vmatpush1.msra.mxu0 0.0
    %82 = vmatprep.subr.mxu0 0.0
    %83 = vmatpush1.msra.mxu0 0.0
    %84 = vmatprep.subr.mxu0 0.0
    %85 = vmatpush1.msra.mxu0 %v48
    %86 = vmatprep.subr.mxu0 0.0
    %87 = vmatpush1.msra.mxu0 %v47
    %88 = vmatprep.subr.mxu0 0.0
    %89 = vmatpush1.msra.mxu0 %v46
    %90 = vmatprep.subr.mxu0 0.0
    %91 = vmatpush1.msra.mxu0 %v45
    %92 = vmatprep.subr.mxu0 0.0
    %93 = vmatpush2.msra.mxu0 0.0
    %94 = vmatprep.subr.mxu0 0.0
    %95 = vmatpush2.msra.mxu0 0.0
    %96 = vmatprep.subr.mxu0 0.0
    %97 = vmatpush2.msra.mxu0 0.0
    %98 = vmatprep.subr.mxu0 0.0
    %99 = vmatpush2.msra.mxu0 0.0
    %100 = vmatprep.subr.mxu0 0.0
    %101 = vmatpush2.msra.mxu0 0.0
    %102 = vmatprep.subr.mxu0 0.0
    %103 = vmatpush2.msra.mxu0 0.0
    %104 = vmatprep.subr.mxu0 0.0
    %105 = vmatpush2.msra.mxu0 0.0
    %106 = vmatprep.subr.mxu0 0.0
    %107 = vmatpush2.msra.mxu0 0.0
    %108 = vmatprep.subr.mxu0 0.0
    %109 = vmatpush2.msra.mxu0 0.0
    %110 = vmatprep.subr.mxu0 0.0
    %111 = vmatpush2.msra.mxu0 0.0
    %112 = vmatprep.subr.mxu0 0.0
    %113 = vmatpush2.msra.mxu0 0.0
    %114 = vmatprep.subr.mxu0 0.0
    %115 = vmatpush2.msra.mxu0 0.0
    %116 = vmatprep.subr.mxu0 0.0
    %117 = vmatpush2.msra.mxu0 0.0
    %118 = vmatprep.subr.mxu0 0.0
    %119 = vmatpush2.msra.mxu0 0.0
    %120 = vmatprep.subr.mxu0 0.0
    %121 = vmatpush2.msra.mxu0 0.0
    %122 = vmatprep.subr.mxu0 0.0
    %123 = vmatpush2.msra.mxu0 0.0
    %124 = vmatprep.mubr.f32.mxu0 0.0
    %125 = vmatmul.mubr.f32.gmra.mxu0 %v58
    %v126 = vpop.f32.mrf.mxu0
    %v127 = vadd.f32 %v54, %v126
    %v128 = vpop.f32.mrf.mxu0
    %129 = vdwg.mxu0
    %vm130 = vcmask 130048
    %131 = vst.msk [vmem:[#allocation7] sm:$0xff] %vm130, %v127
    %133 = vrot.lane.b32.xlu0 %v127, 112
    %v134 = vpop.permute.xlu0 %133
    %136 = vst.msk [vmem:[#allocation8] sm:$0xff] %vm130, %v134
    // Predicated region
    $region22: #{tpu_custom_call.1} parent=1 // pred_check
      _
    $region23: #{tpu_custom_call.1} parent=1 // pred_check_branch
      %138 = sbr.rel (0) target = $region25
    $region24: #{tpu_custom_call.1} parent=1 // pred_region
      %s140 = ssub.s32 128, 128
      %141 = vsyncadd [#allocation4], %s140
      %s143 = sshll.u32 [#allocation7], 4
      %s144 = int_to_ptr.vmem [resolvable:$true] %s143
      %146 = dma.vmem_to_hbm [thread:$0]  %s144, 128, %s3, [#allocation4]
    $region25: #{tpu_custom_call.1} parent=1 // pred_fallthru
      _
    // Predicated region
    $region26: #{tpu_custom_call.1} parent=1 // pred_check
      _
    $region27: #{tpu_custom_call.1} parent=1 // pred_check_branch
      %148 = sbr.rel (0) target = $region29
    $region28: #{tpu_custom_call.1} parent=1 // pred_region
      %s150 = ssub.s32 128, 128
      %151 = vsyncadd [#allocation9], %s150
      %s153 = sshll.u32 [#allocation8], 4
      %s154 = int_to_ptr.vmem [resolvable:$true] %s153
      %156 = dma.vmem_to_hbm [thread:$0]  %s154, 128, %s4, [#allocation9]
    $region29: #{tpu_custom_call.1} parent=1 // pred_fallthru
      _
    // Predicated region
    $region30: #{tpu_custom_call.1} parent=1 // pred_check
      _
    $region31: #{tpu_custom_call.1} parent=1 // pred_check_branch
      %158 = sbr.rel (0) target = $region33
    $region32: #{tpu_custom_call.1} parent=1 // pred_region
      %159 = dma.done [#allocation4], 128
    $region33: #{tpu_custom_call.1} parent=1 // pred_fallthru
      _
    // Predicated region
    $region34: #{tpu_custom_call.1} parent=1 // pred_check
      _
    $region35: #{tpu_custom_call.1} parent=1 // pred_check_branch
      %161 = sbr.rel (0) target = $region37
    $region36: #{tpu_custom_call.1} parent=1 // pred_region
      %162 = dma.done [#allocation9], 128
    $region37: #{tpu_custom_call.1} parent=1 // pred_fallthru
      _
    %163 = vsyncpa [#allocation3], 1
    %164 = vsyncpa [#allocation6], 1
    %165 = vsyncpa [#allocation4], 1
    %166 = vsyncpa [#allocation9], 1

</llo_original>
